<compile_context>
chip_gen: v7x
topology: tpu7x:2x2x1
jax: 0.10.0
libtpu: 0.0.40
codegen_flags: <defaults>
</compile_context>

<pallas_src>
import jax
import jax.numpy as jnp
from jax.experimental import pallas as pl
from jax.experimental.pallas import tpu as pltpu

HIDDEN = 32  # encoder hidden size (small, per task instructions)


# ----------------------------------------------------------------------------
# Pallas kernel: fused QA head (start / end / relevance logits)
# ----------------------------------------------------------------------------
def reader_head_kernel(seq_ref, w_ref, b_ref, start_ref, end_ref, rank_ref):
    # seq_ref : (TN, L, H)  activations (bf16 or f32)
    # w_ref   : (8, H) f32  row 0 = start, row 1 = end, row 2 = relevance
    # b_ref   : (8,)   f32  matching biases (SMEM scalars)
    seq = seq_ref[...].astype(jnp.float32)            # (TN, L, H)
    w = w_ref[...]                                    # (8, H)

    w_start = w[0:1, :][None, :, :]                   # (1, 1, H)
    w_end = w[1:2, :][None, :, :]                     # (1, 1, H)

    # start/end logits for every token: broadcast-mul + lane reduce -> (TN, L)
    start_ref[...] = jnp.sum(seq * w_start, axis=2) + b_ref[0]
    end_ref[...] = jnp.sum(seq * w_end, axis=2) + b_ref[1]

    # relevance logit from the [CLS] token only (position 0 of the full-L block)
    cls = seq[:, 0, :]                                # (TN, H)
    rank_ref[...] = jnp.sum(cls * w[2:3, :], axis=1, keepdims=True) + b_ref[2]


def reader_head(seq_out, w_qa, b_qa, w_cls, b_cls, *, tn=None):
    """seq_out: (N, L, H); w_qa: (H, 2); b_qa: (2,); w_cls: (H, 1); b_cls: (1,)."""
    N, L, H = seq_out.shape

    # Pack both linear heads into one sublane-aligned (8, H) weight.
    w = jnp.zeros((8, H), jnp.float32)
    w = w.at[0:2, :].set(w_qa.T.astype(jnp.float32))   # qa_outputs.weight
    w = w.at[2:3, :].set(w_cls.T.astype(jnp.float32))  # qa_classifier.weight
    b = jnp.zeros((8,), jnp.float32)
    b = b.at[0:2].set(b_qa.astype(jnp.float32))
    b = b.at[2].set(b_cls[0].astype(jnp.float32))

    # Tile the passage axis: target ~4 MiB of activations per grid step so the
    # per-step pipeline overhead (~0.35 us) is amortized against the HBM
    # stream, while the double-buffered footprint (inputs + f32 outputs)
    # stays around 10 MiB -- safe under v7x's 64 MiB VMEM.
    if tn is None:
        row_bytes = L * H * seq_out.dtype.itemsize
        tn = (4 * 1024 * 1024) // max(row_bytes, 1)
    if tn >= N:
        tn = N                      # single full block (test-sized inputs)
    else:
        tn = max(8, (tn // 8) * 8)  # keep sublane-aligned tiles
    grid = (pl.cdiv(N, tn),)

    flops = 2 * N * L * H * 2 + 2 * N * H
    bytes_accessed = (N * L * H * seq_out.dtype.itemsize
                      + 2 * N * L * 4 + N * 4 + w.size * 4 + b.size * 4)

    out_shapes = (
        jax.ShapeDtypeStruct((N, L), jnp.float32),   # start_logits
        jax.ShapeDtypeStruct((N, L), jnp.float32),   # end_logits
        jax.ShapeDtypeStruct((N, 1), jnp.float32),   # relevance_logits
    )
    return pl.pallas_call(
        reader_head_kernel,
        out_shape=out_shapes,
        grid=grid,
        in_specs=[
            pl.BlockSpec((tn, L, H), lambda n: (n, 0, 0)),
            pl.BlockSpec((8, H), lambda n: (0, 0)),
            pl.BlockSpec(memory_space=pltpu.MemorySpace.SMEM),
        ],
        out_specs=(
            pl.BlockSpec((tn, L), lambda n: (n, 0)),
            pl.BlockSpec((tn, L), lambda n: (n, 0)),
            pl.BlockSpec((tn, 1), lambda n: (n, 0)),
        ),
        compiler_params=pltpu.CompilerParams(
            dimension_semantics=("parallel",),
            vmem_limit_bytes=48 * 1024 * 1024,
        ),
        cost_estimate=pl.CostEstimate(
            flops=flops, transcendentals=0, bytes_accessed=bytes_accessed),
    )(seq_out, w, b)


# ----------------------------------------------------------------------------
# Synthetic encoder (the real encoder is an injected external module)
# ----------------------------------------------------------------------------
def synthetic_encoder(params, input_ids, attention_mask):
    # TODO(synk): the encoder is an external module (e.g. BERT); this is a
    # deterministic embedding + tanh-MLP stub producing bf16 sequence_output
    # [N, L, H], matching a bf16 TPU encoder.
    emb = params["tok_emb"][input_ids]                              # (N, L, H)
    pos = params["pos_emb"][None, : input_ids.shape[1], :]          # (1, L, H)
    h = jnp.tanh((emb + pos) @ params["proj_w"] + params["proj_b"])
    h = h * attention_mask[..., None].astype(h.dtype)
    return h.astype(jnp.bfloat16)


# ----------------------------------------------------------------------------
# Reader.forward
# ----------------------------------------------------------------------------
def reader_forward(params, input_ids, attention_mask):
    B, D, L = input_ids.shape
    ids = input_ids.reshape(B * D, L)
    mask = attention_mask.reshape(B * D, L)
    seq_out = synthetic_encoder(params, ids, mask)                  # (B*D, L, H)
    start, end, rank = reader_head(
        seq_out, params["qa_w"], params["qa_b"], params["cls_w"], params["cls_b"]
    )
    return start.reshape(B, D, L), end.reshape(B, D, L), rank.reshape(B, D)


def reader_forward_reference(params, input_ids, attention_mask):
    """Pure-JAX reference of the same forward (no Pallas) for correctness check."""
    B, D, L = input_ids.shape
    ids = input_ids.reshape(B * D, L)
    mask = attention_mask.reshape(B * D, L)
    seq_out = synthetic_encoder(params, ids, mask).astype(jnp.float32)
    hi = jax.lax.Precision.HIGHEST
    logits = jnp.einsum("nlh,hk->nlk", seq_out, params["qa_w"],
                        precision=hi) + params["qa_b"]              # (N, L, 2)
    start, end = logits[..., 0], logits[..., 1]
    rank = jnp.einsum("nh,hk->nk", seq_out[:, 0, :], params["cls_w"],
                      precision=hi) + params["cls_b"]               # (N, 1)
    return start.reshape(B, D, L), end.reshape(B, D, L), rank.reshape(B, D)


def init_params(key, vocab, max_len, hidden):
    ks = jax.random.split(key, 7)
    scale = 0.02
    return {
        "tok_emb": scale * jax.random.normal(ks[0], (vocab, hidden), jnp.float32),
        "pos_emb": scale * jax.random.normal(ks[1], (max_len, hidden), jnp.float32),
        "proj_w": scale * jax.random.normal(ks[2], (hidden, hidden), jnp.float32),
        "proj_b": jnp.zeros((hidden,), jnp.float32),
        "qa_w": scale * jax.random.normal(ks[3], (hidden, 2), jnp.float32),
        "qa_b": scale * jax.random.normal(ks[4], (2,), jnp.float32),
        "cls_w": scale * jax.random.normal(ks[5], (hidden, 1), jnp.float32),
        "cls_b": scale * jax.random.normal(ks[6], (1,), jnp.float32),
    }


if __name__ == "__main__":
    key = jax.random.PRNGKey(0)
    B, D, L, H, VOCAB = 2, 3, 8, HIDDEN, 50

    kp, ki, km = jax.random.split(key, 3)
    params = init_params(kp, VOCAB, L, H)
    input_ids = jax.random.randint(ki, (B, D, L), 0, VOCAB, dtype=jnp.int32)
    attention_mask = (jax.random.uniform(km, (B, D, L)) > 0.2).astype(jnp.int32)

    start, end, rank = reader_forward(params, input_ids, attention_mask)
    jax.block_until_ready((start, end, rank))

    # Correctness check against pure-JAX reference.
    start_r, end_r, rank_r = reader_forward_reference(params, input_ids, attention_mask)
    assert start.shape == (B, D, L) and end.shape == (B, D, L) and rank.shape == (B, D)
    assert jnp.allclose(start, start_r, atol=1e-5)
    assert jnp.allclose(end, end_r, atol=1e-5)
    assert jnp.allclose(rank, rank_r, atol=1e-5)

    print("KERNEL_OK")
</pallas_src>

<mosaic_0001>
module attributes {stable_mosaic.version = 11 : i64} {
  func.func @reader_head_kernel(%arg0: i32, %arg1: memref<6x8x32xbf16, #tpu.memory_space<vmem>>, %arg2: memref<8x32xf32, #tpu.memory_space<vmem>>, %arg3: memref<8xf32, #tpu.memory_space<smem>>, %arg4: memref<6x8xf32, #tpu.memory_space<vmem>>, %arg5: memref<6x8xf32, #tpu.memory_space<vmem>>, %arg6: memref<6x1xf32, #tpu.memory_space<vmem>>) attributes {dimension_semantics = [#tpu.dimension_semantics<parallel>], iteration_bounds = array<i64: 1>, scalar_prefetch = 0 : i64, scratch_operands = 0 : i64, tpu.core_type = #tpu.core_type<tc>, window_params = [{transform_indices = @transform_0, window_bounds = array<i64: 6, 8, 32>}, {pipeline_mode = #tpu.pipeline_mode<synchronous>, transform_indices = @transform_1, window_bounds = array<i64: 8, 32>}, {transform_indices = @transform_2, window_bounds = array<i64: 8>}, {transform_indices = @transform_3, window_bounds = array<i64: 6, 8>}, {transform_indices = @transform_4, window_bounds = array<i64: 6, 8>}, {transform_indices = @transform_5, window_bounds = array<i64: 6, 1>}]} {
    %c0 = arith.constant 0 : index
    %c0_0 = arith.constant 0 : index
    %c0_1 = arith.constant 0 : index
    %0 = vector.load %arg1[%c0, %c0_0, %c0_1] : memref<6x8x32xbf16, #tpu.memory_space<vmem>>, vector<6x8x32xbf16>
    %1 = arith.extf %0 : vector<6x8x32xbf16> to vector<6x8x32xf32>
    %c0_2 = arith.constant 0 : index
    %c0_3 = arith.constant 0 : index
    %2 = vector.load %arg2[%c0_2, %c0_3] : memref<8x32xf32, #tpu.memory_space<vmem>>, vector<8x32xf32>
    %3 = vector.extract_strided_slice %2 {offsets = [0, 0], sizes = [1, 32], strides = [1, 1]} : vector<8x32xf32> to vector<1x32xf32>
    %4 = vector.shape_cast %3 : vector<1x32xf32> to vector<1x1x32xf32>
    %5 = vector.extract_strided_slice %2 {offsets = [1, 0], sizes = [1, 32], strides = [1, 1]} : vector<8x32xf32> to vector<1x32xf32>
    %6 = vector.shape_cast %5 : vector<1x32xf32> to vector<1x1x32xf32>
    %7 = vector.broadcast %4 : vector<1x1x32xf32> to vector<6x8x32xf32>
    %8 = arith.mulf %1, %7 : vector<6x8x32xf32>
    %cst = arith.constant dense<0.000000e+00> : vector<6x8xf32>
    %9 = vector.multi_reduction <add>, %8, %cst [2] : vector<6x8x32xf32> to vector<6x8xf32>
    %c0_4 = arith.constant 0 : index
    %10 = memref.load %arg3[%c0_4] : memref<8xf32, #tpu.memory_space<smem>>
    %11 = vector.broadcast %10 : f32 to vector<6x8xf32>
    %12 = arith.addf %9, %11 : vector<6x8xf32>
    %c0_5 = arith.constant 0 : index
    %c0_6 = arith.constant 0 : index
    %13 = vector.load %arg4[%c0_5, %c0_6] : memref<6x8xf32, #tpu.memory_space<vmem>>, vector<6x8xf32>
    tpu.vector_store %arg4[%c0_5, %c0_6], %12 {strides = array<i32>} : memref<6x8xf32, #tpu.memory_space<vmem>>, vector<6x8xf32>,
    %14 = vector.broadcast %6 : vector<1x1x32xf32> to vector<6x8x32xf32>
    %15 = arith.mulf %1, %14 : vector<6x8x32xf32>
    %cst_7 = arith.constant dense<0.000000e+00> : vector<6x8xf32>
    %16 = vector.multi_reduction <add>, %15, %cst_7 [2] : vector<6x8x32xf32> to vector<6x8xf32>
    %c1 = arith.constant 1 : index
    %17 = memref.load %arg3[%c1] : memref<8xf32, #tpu.memory_space<smem>>
    %18 = vector.broadcast %17 : f32 to vector<6x8xf32>
    %19 = arith.addf %16, %18 : vector<6x8xf32>
    %c0_8 = arith.constant 0 : index
    %c0_9 = arith.constant 0 : index
    %20 = vector.load %arg5[%c0_8, %c0_9] : memref<6x8xf32, #tpu.memory_space<vmem>>, vector<6x8xf32>
    tpu.vector_store %arg5[%c0_8, %c0_9], %19 {strides = array<i32>} : memref<6x8xf32, #tpu.memory_space<vmem>>, vector<6x8xf32>,
    %21 = vector.extract_strided_slice %1 {offsets = [0, 0, 0], sizes = [6, 1, 32], strides = [1, 1, 1]} : vector<6x8x32xf32> to vector<6x1x32xf32>
    %22 = vector.shape_cast %21 : vector<6x1x32xf32> to vector<6x32xf32>
    %23 = vector.extract_strided_slice %2 {offsets = [2, 0], sizes = [1, 32], strides = [1, 1]} : vector<8x32xf32> to vector<1x32xf32>
    %24 = vector.broadcast %23 : vector<1x32xf32> to vector<6x32xf32>
    %25 = arith.mulf %22, %24 : vector<6x32xf32>
    %cst_10 = arith.constant dense<0.000000e+00> : vector<6xf32>
    %26 = vector.multi_reduction <add>, %25, %cst_10 [1] : vector<6x32xf32> to vector<6xf32>
    %27 = vector.shape_cast %26 : vector<6xf32> to vector<6x1xf32>
    %c2 = arith.constant 2 : index
    %28 = memref.load %arg3[%c2] : memref<8xf32, #tpu.memory_space<smem>>
    %29 = vector.broadcast %28 : f32 to vector<6x1xf32>
    %30 = arith.addf %27, %29 : vector<6x1xf32>
    %c0_11 = arith.constant 0 : index
    %c0_12 = arith.constant 0 : index
    %31 = vector.load %arg6[%c0_11, %c0_12] : memref<6x1xf32, #tpu.memory_space<vmem>>, vector<6x1xf32>
    tpu.vector_store %arg6[%c0_11, %c0_12], %30 {strides = array<i32>} : memref<6x1xf32, #tpu.memory_space<vmem>>, vector<6x1xf32>,
    return
  }
  func.func @transform_0(%arg0: i32) -> (i32, i32, i32) {
    %c0_i32 = arith.constant 0 : i32
    %c0_i32_0 = arith.constant 0 : i32
    %c0_i32_1 = arith.constant 0 : i32
    return %arg0, %c0_i32, %c0_i32_0 : i32, i32, i32
  }
  func.func @transform_1(%arg0: i32) -> (i32, i32) {
    %c0_i32 = arith.constant 0 : i32
    %c0_i32_0 = arith.constant 0 : i32
    %c0_i32_1 = arith.constant 0 : i32
    return %c0_i32, %c0_i32_0 : i32, i32
  }
  func.func @transform_2(%arg0: i32) -> i32 {
    %c0_i32 = arith.constant 0 : i32
    %c0_i32_0 = arith.constant 0 : i32
    return %c0_i32 : i32
  }
  func.func @transform_3(%arg0: i32) -> (i32, i32) {
    %c0_i32 = arith.constant 0 : i32
    %c0_i32_0 = arith.constant 0 : i32
    return %arg0, %c0_i32 : i32, i32
  }
  func.func @transform_4(%arg0: i32) -> (i32, i32) {
    %c0_i32 = arith.constant 0 : i32
    %c0_i32_0 = arith.constant 0 : i32
    return %arg0, %c0_i32 : i32, i32
  }
  func.func @transform_5(%arg0: i32) -> (i32, i32) {
    %c0_i32 = arith.constant 0 : i32
    %c0_i32_0 = arith.constant 0 : i32
    return %arg0, %c0_i32 : i32, i32
  }
}

</mosaic_0001>

<llo_original>
// kernel: tpu_custom_call.1
$region0: #{tpu_custom_call.1}
  #allocation0 [shape = 'u32[]', space=smem, size = 0x4, offset = 0x4, fixed_abs, tag = 'smem constant byte address 0x4 - core index']
  #allocation1 [shape = 'u32[144,128]{1,0:T(1,128)}', space=vmem, size = 0x12000, scoped, tag = 'internal scratch']
  %s0 = inlined_call_operand.hbm [shape: bf16[6,8,32], index: 0, kind: input, shape index: {}]
  %s1 = inlined_call_operand.hbm [shape: f32[8,32], index: 1, kind: input, shape index: {}]
  %s2 = inlined_call_operand.vmem [shape: f32[8], index: 2, kind: input, shape index: {}]
  %s3 = inlined_call_operand.hbm [shape: f32[6,8], index: 3, kind: output, shape index: {0}]
  %s4 = inlined_call_operand.hbm [shape: f32[6,8], index: 4, kind: output, shape index: {1}]
  %s5 = inlined_call_operand.vmem [shape: f32[6,1], index: 5, kind: output, shape index: {2}]
  %6 = xla_tuple %s3, %s4, %s5
  %s7 = sld [smem:[#allocation0]]
  $region50: #{tpu_custom_call.1} parent=0
    _
  %s9 = ssub.s32 1, %s7
  %s10 = scalar_select 0, %s9, %s7
  $region1: #{tpu_custom_call.1} parent=0
    #allocation2 [shape = 'u8[12288]{0}', space=vmem, size = 0x3000, scoped, tag = 'input window, operand 0, single buffered']
    #allocation3 [shape = 's32[1]{0}', space=sflag, size = 0x4, scoped, tag = 'scoped memory for tpu_custom_call.1']
    #allocation4 [shape = 's32[1]{0}', space=sflag, size = 0x4, scoped, tag = 'scoped memory for tpu_custom_call.1']
    #allocation5 [shape = 's32[1]{0}', space=sflag, size = 0x4, scoped, tag = 'scoped memory for tpu_custom_call.1']
    #allocation6 [shape = 'u8[4096]{0}', space=vmem, size = 0x1000, scoped, tag = 'input window, operand 1, single buffered']
    #allocation7 [shape = 's32[1]{0}', space=sflag, size = 0x4, scoped, tag = 'scoped memory for tpu_custom_call.1']
    #allocation8 [shape = 'u8[512]{0}', space=smem, size = 0x200, scoped, tag = 'input window, operand 2, single buffered']
    #allocation9 [shape = 'u8[4096]{0}', space=vmem, size = 0x1000, scoped, tag = 'output window, operand 0, single buffered']
    #allocation10 [shape = 'u8[4096]{0}', space=vmem, size = 0x1000, scoped, tag = 'output window, operand 1, single buffered']
    #allocation11 [shape = 's32[1]{0}', space=sflag, size = 0x4, scoped, tag = 'scoped memory for tpu_custom_call.1']
    %11 = vsyncpa [#allocation3], 0
    %12 = vsyncpa [#allocation7], 0
    %13 = vsyncpa [#allocation5], 0
    %14 = vsyncpa [#allocation4], 0
    %15 = vsyncpa [#allocation11], 0
    // Predicated region
    $region2: #{tpu_custom_call.1} parent=1 // pred_check
      _
    $region3: #{tpu_custom_call.1} parent=1 // pred_check_branch
      %17 = sbr.rel (0) target = $region5
    $region4: #{tpu_custom_call.1} parent=1 // pred_region
      %s19 = ssub.s32 384, 384
      %20 = vsyncadd [#allocation3], %s19
      %s21 = sshll.u32 [#allocation2], 4
      %s22 = int_to_ptr.vmem [resolvable:$true] %s21
      %27 = dma.hbm_to_vmem [thread:$0]  %s0, 384, %s22, [#allocation3], 64, 64, 4
    $region5: #{tpu_custom_call.1} parent=1 // pred_fallthru
      _
    // Predicated region
    $region6: #{tpu_custom_call.1} parent=1 // pred_check
      _
    $region7: #{tpu_custom_call.1} parent=1 // pred_check_branch
      %29 = sbr.rel (0) target = $region9
    $region8: #{tpu_custom_call.1} parent=1 // pred_region
      %s31 = ssub.s32 128, 128
      %32 = vsyncadd [#allocation7], %s31
      %s34 = sshll.u32 [#allocation6], 4
      %s35 = int_to_ptr.vmem [resolvable:$true] %s34
      %37 = dma.hbm_to_vmem [thread:$0]  %s1, 128, %s35, [#allocation7]
    $region9: #{tpu_custom_call.1} parent=1 // pred_fallthru
      _
    // Predicated region
    $region10: #{tpu_custom_call.1} parent=1 // pred_check
      _
    $region11: #{tpu_custom_call.1} parent=1 // pred_check_branch
      %39 = sbr.rel (0) target = $region13
    $region12: #{tpu_custom_call.1} parent=1 // pred_region
      %s41 = ssub.s32 16, 16
      %42 = vsyncadd [#allocation5], %s41
      %s44 = sshll.u32 %s2, 4
      %s45 = int_to_ptr.vmem [resolvable:$true] %s44
      %47 = dma.vmem_to_smem %s45, 16, [#allocation8], [#allocation5]
    $region13: #{tpu_custom_call.1} parent=1 // pred_fallthru
      _
    // Predicated region
    $region14: #{tpu_custom_call.1} parent=1 // pred_check
      _
    $region15: #{tpu_custom_call.1} parent=1 // pred_check_branch
      %49 = sbr.rel (0) target = $region17
    $region16: #{tpu_custom_call.1} parent=1 // pred_region
      %50 = dma.done [#allocation3], 384
    $region17: #{tpu_custom_call.1} parent=1 // pred_fallthru
      _
    // Predicated region
    $region18: #{tpu_custom_call.1} parent=1 // pred_check
      _
    $region19: #{tpu_custom_call.1} parent=1 // pred_check_branch
      %52 = sbr.rel (0) target = $region21
    $region20: #{tpu_custom_call.1} parent=1 // pred_region
      %53 = dma.done [#allocation7], 128
    $region21: #{tpu_custom_call.1} parent=1 // pred_fallthru
      _
    // Predicated region
    $region22: #{tpu_custom_call.1} parent=1 // pred_check
      _
    $region23: #{tpu_custom_call.1} parent=1 // pred_check_branch
      %55 = sbr.rel (0) target = $region25
    $region24: #{tpu_custom_call.1} parent=1 // pred_region
      %56 = dma.done [#allocation5], 16
    $region25: #{tpu_custom_call.1} parent=1 // pred_fallthru
      _
    %57 = sfence
    %v58 = vld [vmem:[#allocation2] sm:$0xf]
    %v59 = vld [vmem:[#allocation2 + $0x4] sm:$0xf]
    %v60 = vld [vmem:[#allocation2 + $0x8] sm:$0xf]
    %v61 = vld [vmem:[#allocation2 + $0xc] sm:$0xf]
    %v62 = vld [vmem:[#allocation2 + $0x10] sm:$0xf]
    %v63 = vld [vmem:[#allocation2 + $0x14] sm:$0xf]
    %v64 = vunpack.c.l.bf16 %v58
    %v65 = vunpack.c.l.bf16 %v59
    %v66 = vunpack.c.l.bf16 %v60
    %v67 = vunpack.c.l.bf16 %v61
    %v68 = vunpack.c.l.bf16 %v62
    %v69 = vunpack.c.l.bf16 %v63
    %v70 = vld [vmem:[#allocation6] sm:$0xff]
    %v71 = vlaneseq
    %v72 = vshrl.u32 %v71, 7
    %v73 = vsub.s32 0, %v72
    %v74 = vrot.slane %v70, %v73
    %v75 = vmul.f32 %v64, %v74
    %v76 = vmul.f32 %v65, %v74
    %v77 = vmul.f32 %v66, %v74
    %v78 = vmul.f32 %v67, %v74
    %v79 = vmul.f32 %v68, %v74
    %v80 = vmul.f32 %v69, %v74
    %vm81 = vcmask 261120
    %v82 = vsel %vm81, %v75, 0.0
    %83 = vadd.xlane.f32.xlu0 %v82
    %v84 = vpop.xlane.xlu0 %83
    %v85 = vsel %vm81, %v76, 0.0
    %86 = vadd.xlane.f32.xlu0 %v85
    %v87 = vpop.xlane.xlu0 %86
    %v88 = vsel %vm81, %v77, 0.0
    %89 = vadd.xlane.f32.xlu0 %v88
    %v90 = vpop.xlane.xlu0 %89
    %v91 = vsel %vm81, %v78, 0.0
    %92 = vadd.xlane.f32.xlu0 %v91
    %v93 = vpop.xlane.xlu0 %92
    %v94 = vsel %vm81, %v79, 0.0
    %95 = vadd.xlane.f32.xlu0 %v94
    %v96 = vpop.xlane.xlu0 %95
    %v97 = vsel %vm81, %v80, 0.0
    %98 = vadd.xlane.f32.xlu0 %v97
    %v99 = vpop.xlane.xlu0 %98
    %s100 = sld [smem:[#allocation8]]
    %v101 = vstv %s100
    %v102 = vadd.f32 %v84, %v101
    %v103 = vadd.f32 %v87, %v101
    %v104 = vadd.f32 %v90, %v101
    %v105 = vadd.f32 %v93, %v101
    %v106 = vadd.f32 %v96, %v101
    %v107 = vadd.f32 %v99, %v101
    %v114 = vlaneseq
    %v115 = vand.u32 %v114, 127
    %v116 = vlaneseq
    %v117 = vshrl.u32 %v116, 7
    %v118 = vsub.s32 %v115, %v117
    %v119 = vrot.slane %v102, %v118
    %v120 = vlaneseq
    %v121 = vshrl.u32 %v120, 7
    %v122 = vsub.s32 %v115, %v121
    %v123 = vrot.slane %v103, %v122
    %v124 = vlaneseq
    %v125 = vshrl.u32 %v124, 7
    %v126 = vsub.s32 %v115, %v125
    %v127 = vrot.slane %v104, %v126
    %v128 = vlaneseq
    %v129 = vshrl.u32 %v128, 7
    %v130 = vsub.s32 %v115, %v129
    %v131 = vrot.slane %v105, %v130
    %v132 = vlaneseq
    %v133 = vshrl.u32 %v132, 7
    %v134 = vsub.s32 %v115, %v133
    %v135 = vrot.slane %v106, %v134
    %v136 = vlaneseq
    %v137 = vshrl.u32 %v136, 7
    %v138 = vsub.s32 %v115, %v137
    %v139 = vrot.slane %v107, %v138
    %vm140 = vcmask 1041409
    %v141 = vsel %vm140, %v123, %v119
    %vm142 = vcmask 1042434
    %v143 = vsel %vm142, %v127, %v141
    %vm144 = vcmask 1043459
    %v145 = vsel %vm144, %v131, %v143
    %vm146 = vcmask 1044484
    %v147 = vsel %vm146, %v135, %v145
    %vm148 = vcmask 1045509
    %v149 = vsel %vm148, %v139, %v147
    %vm151 = vcmask 62464
    %152 = vst.msk [vmem:[#allocation9] sm:$0x3f] %vm151, %v149
    %v153 = vlaneseq
    %v154 = vshrl.u32 %v153, 7
    %v155 = vsub.s32 1, %v154
    %v156 = vrot.slane %v70, %v155
    %v157 = vmul.f32 %v64, %v156
    %v158 = vmul.f32 %v65, %v156
    %v159 = vmul.f32 %v66, %v156
    %v160 = vmul.f32 %v67, %v156
    %v161 = vmul.f32 %v68, %v156
    %v162 = vmul.f32 %v69, %v156
    %v163 = vsel %vm81, %v157, 0.0
    %164 = vadd.xlane.f32.xlu0 %v163
    %v165 = vpop.xlane.xlu0 %164
    %v166 = vsel %vm81, %v158, 0.0
    %167 = vadd.xlane.f32.xlu0 %v166
    %v168 = vpop.xlane.xlu0 %167
    %v169 = vsel %vm81, %v159, 0.0
    %170 = vadd.xlane.f32.xlu0 %v169
    %v171 = vpop.xlane.xlu0 %170
    %v172 = vsel %vm81, %v160, 0.0
    %173 = vadd.xlane.f32.xlu0 %v172
    %v174 = vpop.xlane.xlu0 %173
    %v175 = vsel %vm81, %v161, 0.0
    %176 = vadd.xlane.f32.xlu0 %v175
    %v177 = vpop.xlane.xlu0 %176
    %v178 = vsel %vm81, %v162, 0.0
    %179 = vadd.xlane.f32.xlu0 %v178
    %v180 = vpop.xlane.xlu0 %179
    %s181 = sld [smem:[#allocation8 + $0x1]]
    %v182 = vstv %s181
    %v183 = vadd.f32 %v165, %v182
    %v184 = vadd.f32 %v168, %v182
    %v185 = vadd.f32 %v171, %v182
    %v186 = vadd.f32 %v174, %v182
    %v187 = vadd.f32 %v177, %v182
    %v188 = vadd.f32 %v180, %v182
    %v195 = vlaneseq
    %v196 = vshrl.u32 %v195, 7
    %v197 = vsub.s32 %v115, %v196
    %v198 = vrot.slane %v183, %v197
    %v199 = vlaneseq
    %v200 = vshrl.u32 %v199, 7
    %v201 = vsub.s32 %v115, %v200
    %v202 = vrot.slane %v184, %v201
    %v203 = vlaneseq
    %v204 = vshrl.u32 %v203, 7
    %v205 = vsub.s32 %v115, %v204
    %v206 = vrot.slane %v185, %v205
    %v207 = vlaneseq
    %v208 = vshrl.u32 %v207, 7
    %v209 = vsub.s32 %v115, %v208
    %v210 = vrot.slane %v186, %v209
    %v211 = vlaneseq
    %v212 = vshrl.u32 %v211, 7
    %v213 = vsub.s32 %v115, %v212
    %v214 = vrot.slane %v187, %v213
    %v215 = vlaneseq
    %v216 = vshrl.u32 %v215, 7
    %v217 = vsub.s32 %v115, %v216
    %v218 = vrot.slane %v188, %v217
    %v219 = vsel %vm140, %v202, %v198
    %v220 = vsel %vm142, %v206, %v219
    %v221 = vsel %vm144, %v210, %v220
    %v222 = vsel %vm146, %v214, %v221
    %v223 = vsel %vm148, %v218, %v222
    %225 = vst.msk [vmem:[#allocation10] sm:$0x3f] %vm151, %v223
    %v226 = vlaneseq
    %v227 = vshrl.u32 %v226, 7
    %v228 = vsub.s32 2, %v227
    %v229 = vrot.slane %v70, %v228
    %v230 = vmul.f32 %v64, %v229
    %v231 = vmul.f32 %v65, %v229
    %v232 = vmul.f32 %v66, %v229
    %v233 = vmul.f32 %v67, %v229
    %v234 = vmul.f32 %v68, %v229
    %v235 = vmul.f32 %v69, %v229
    %v242 = vrot.slane %v231, 7
    %v243 = vsel %vm140, %v242, %v230
    %v244 = vrot.slane %v232, 6
    %v245 = vsel %vm142, %v244, %v243
    %v246 = vrot.slane %v233, 5
    %v247 = vsel %vm144, %v246, %v245
    %v248 = vrot.slane %v234, 4
    %v249 = vsel %vm146, %v248, %v247
    %v250 = vrot.slane %v235, 3
    %v251 = vsel %vm148, %v250, %v249
    %vm253 = vcmask 259072
    %v254 = vsel %vm253, %v251, 0.0
    %255 = vadd.xlane.f32.xlu0 %v254
    %v256 = vpop.xlane.xlu0 %255
    %s257 = sld [smem:[#allocation8 + $0x2]]
    %v258 = vstv %s257
    %v259 = vadd.f32 %v256, %v258
    %vm260 = vcmask 5120
    %261 = vst.msk [vmem:[%s5] sm:$0x3f] %vm260, %v259
    // Predicated region
    $region26: #{tpu_custom_call.1} parent=1 // pred_check
      _
    $region27: #{tpu_custom_call.1} parent=1 // pred_check_branch
      %263 = sbr.rel (0) target = $region29
    $region28: #{tpu_custom_call.1} parent=1 // pred_region
      %s265 = ssub.s32 128, 128
      %266 = vsyncadd [#allocation4], %s265
      %s268 = sshll.u32 [#allocation9], 4
      %s269 = int_to_ptr.vmem [resolvable:$true] %s268
      %271 = dma.vmem_to_hbm [thread:$0]  %s269, 128, %s3, [#allocation4]
    $region29: #{tpu_custom_call.1} parent=1 // pred_fallthru
      _
    // Predicated region
    $region30: #{tpu_custom_call.1} parent=1 // pred_check
      _
    $region31: #{tpu_custom_call.1} parent=1 // pred_check_branch
      %273 = sbr.rel (0) target = $region33
    $region32: #{tpu_custom_call.1} parent=1 // pred_region
      %s275 = ssub.s32 128, 128
      %276 = vsyncadd [#allocation11], %s275
      %s278 = sshll.u32 [#allocation10], 4
      %s279 = int_to_ptr.vmem [resolvable:$true] %s278
      %281 = dma.vmem_to_hbm [thread:$0]  %s279, 128, %s4, [#allocation11]
    $region33: #{tpu_custom_call.1} parent=1 // pred_fallthru
      _
    // Predicated region
    $region34: #{tpu_custom_call.1} parent=1 // pred_check
      _
    $region35: #{tpu_custom_call.1} parent=1 // pred_check_branch
      %283 = sbr.rel (0) target = $region37
    $region36: #{tpu_custom_call.1} parent=1 // pred_region
      _
    $region37: #{tpu_custom_call.1} parent=1 // pred_fallthru
      _
    // Predicated region
    $region38: #{tpu_custom_call.1} parent=1 // pred_check
      _
    $region39: #{tpu_custom_call.1} parent=1 // pred_check_branch
      %285 = sbr.rel (0) target = $region41
    $region40: #{tpu_custom_call.1} parent=1 // pred_region
      %286 = dma.done [#allocation4], 128
    $region41: #{tpu_custom_call.1} parent=1 // pred_fallthru
      _
    // Predicated region
    $region42: #{tpu_custom_call.1} parent=1 // pred_check
      _
    $region43: #{tpu_custom_call.1} parent=1 // pred_check_branch
      %288 = sbr.rel (0) target = $region45
    $region44: #{tpu_custom_call.1} parent=1 // pred_region
      %289 = dma.done [#allocation11], 128
    $region45: #{tpu_custom_call.1} parent=1 // pred_fallthru
      _
    // Predicated region
    $region46: #{tpu_custom_call.1} parent=1 // pred_check
      _
    $region47: #{tpu_custom_call.1} parent=1 // pred_check_branch
      %291 = sbr.rel (0) target = $region49
    $region48: #{tpu_custom_call.1} parent=1 // pred_region
      _
    $region49: #{tpu_custom_call.1} parent=1 // pred_fallthru
      _
    %292 = vsyncpa [#allocation3], 1
    %293 = vsyncpa [#allocation7], 1
    %294 = vsyncpa [#allocation4], 1
    %295 = vsyncpa [#allocation11], 1
    %296 = vsyncpa [#allocation5], 1

</llo_original>
